<compile_context>
chip_gen: v5e
topology: v5e:2x2
jax: 0.10.0
libtpu: 0.0.40
codegen_flags: <defaults>
</compile_context>

<pallas_src>
import jax
import jax.numpy as jnp
from jax.experimental import pallas as pl
from jax.experimental.pallas import tpu as pltpu

IN_F = 2
HIDDEN = 3
OUT_F = 2
LANE = 128


def mlp_kernel(w1_ref, w2_ref, c_ref, x_ref, o_ref):
    # x_ref/o_ref: (R, 128) f32 blocks of the flattened row-major (B, 2) buffer.
    #   Lane parity: even lane = feature 0, odd lane = feature 1 of the batch
    #   element occupying that (even, odd) lane pair.
    # w1_ref: (3, 2) = 0.5 * fc1.weight   (SMEM scalars)
    # w2_ref: (2, 3) = 0.5 * fc2.weight   (SMEM scalars)
    # c_ref : (2,)   = 0.5 * fc2.weight.sum(axis=1)
    s = x_ref[...]
    w = s.shape[1]
    prev = pltpu.roll(s, shift=1, axis=1)      # prev[c] = s[c-1]
    nxt = pltpu.roll(s, shift=w - 1, axis=1)   # nxt[c]  = s[c+1]

    lane = jax.lax.broadcasted_iota(jnp.int32, s.shape, 1)
    even = (lane & 1) == 0

    # Both features of this lane's batch element (roll wrap-around lanes are never
    # selected: lane 0 is even -> takes s, lane w-1 is odd -> takes s).
    x0 = jnp.where(even, s, prev)
    x1 = jnp.where(even, nxt, s)

    # y = c_k + sum_j w2'[k,j] * tanh(w1'[j,0]*x0 + w1'[j,1]*x1); the output feature k is
    # chosen by lane parity so the store stays interleaved and fully lane/sublane-dense.
    y = jnp.where(even, c_ref[0], c_ref[1])
    for j in range(HIDDEN):
        t = jnp.tanh(x0 * w1_ref[j, 0] + x1 * w1_ref[j, 1])         # EUP
        y = y + t * jnp.where(even, w2_ref[0, j], w2_ref[1, j])     # VPU MAD
    o_ref[...] = y.astype(o_ref.dtype)


def mlp_forward(x, w1, w2, *, target_block_elems=1 << 20):
    """x: (B, 2) f32; w1: (3, 2); w2: (2, 3) — PyTorch fc1/fc2 weight layouts."""
    B = x.shape[0]
    assert x.shape == (B, IN_F)

    # Constant-fold the sigmoid affine: sigmoid(h) = 0.5*tanh(0.5*h) + 0.5 (exact).
    w1h = (0.5 * w1).astype(jnp.float32)
    w2h = (0.5 * w2).astype(jnp.float32)
    c = (0.5 * jnp.sum(w2, axis=1)).astype(jnp.float32)

    total = B * IN_F
    flat = jnp.reshape(x, (total,))            # metadata-only (row-major contiguous)
    if total % LANE != 0:
        # TODO(synk): B % 64 != 0 pays one wrapper-side flat pad + slice (an extra HBM
        # pass); batches that are multiples of 64 hit the fully zero-copy path.
        padded = pl.cdiv(total, LANE) * LANE
        flat = jnp.pad(flat, (0, padded - total))
    else:
        padded = total
    rows = padded // LANE
    x2d = jnp.reshape(flat, (rows, LANE))      # metadata-only

    # Row tile: up to ~target_block_elems f32 per block (multiple of 8 rows), and >=2
    # grid steps whenever possible so a 2-TC chip (v7x) gets balanced "parallel" work.
    max_r = max(8, ((target_block_elems // LANE) // 8) * 8)
    if rows >= 16:
        block_rows = min(max_r, max(8, (pl.cdiv(rows, 2) // 8) * 8))
    else:
        block_rows = rows                      # block dim == full array dim: allowed
    num_blocks = pl.cdiv(rows, block_rows)     # ragged tail handled by block masking

    block_bytes = block_rows * LANE * 4
    vmem_limit = min(48 * 1024 * 1024, max(16 * 1024 * 1024, 6 * block_bytes))

    out2d = pl.pallas_call(
        mlp_kernel,
        out_shape=jax.ShapeDtypeStruct((rows, LANE), x.dtype),
        grid=(num_blocks,),
        in_specs=[
            pl.BlockSpec(memory_space=pltpu.MemorySpace.SMEM),    # 0.5*w1 scalars
            pl.BlockSpec(memory_space=pltpu.MemorySpace.SMEM),    # 0.5*w2 scalars
            pl.BlockSpec(memory_space=pltpu.MemorySpace.SMEM),    # folded sigmoid const
            pl.BlockSpec((block_rows, LANE), lambda i: (i, 0)),   # x row tile
        ],
        out_specs=pl.BlockSpec((block_rows, LANE), lambda i: (i, 0)),
        compiler_params=pltpu.CompilerParams(
            dimension_semantics=("parallel",),
            vmem_limit_bytes=vmem_limit,
        ),
    )(w1h, w2h, c, x2d)

    out_flat = jnp.reshape(out2d, (padded,))
    if padded != total:
        out_flat = out_flat[:total]
    return jnp.reshape(out_flat, (B, OUT_F))   # metadata-only on the zero-copy path


if __name__ == "__main__":
    # Deterministic parameters from the PyTorch module __init__.
    w1 = jnp.array([[1.0, 2.0], [0.3, 0.4], [2.0, 1.0]], dtype=jnp.float32)  # fc1.weight (3,2)
    w2 = jnp.array([[1.0, 0.5, 2.0], [2.0, 1.0, 1.0]], dtype=jnp.float32)    # fc2.weight (2,3)

    key = jax.random.PRNGKey(0)
    B = 8192   # small (64 KiB of input); multiple of 64 -> zero-copy path, 2 grid steps
    x = jax.random.normal(key, (B, IN_F), dtype=jnp.float32)

    out = jax.block_until_ready(mlp_forward(x, w1, w2))

    # Pure-JAX reference (same semantics as the PyTorch forward).
    ref = jax.nn.sigmoid(x @ w1.T) @ w2.T
    assert out.shape == (B, OUT_F)
    assert jnp.allclose(out, ref, atol=1e-5, rtol=1e-5), "mismatch vs reference"

    print("KERNEL_OK")
</pallas_src>

<mosaic_0001>
module attributes {stable_mosaic.version = 11 : i64} {
  func.func @mlp_kernel(%arg0: i32, %arg1: memref<3x2xf32, #tpu.memory_space<smem>>, %arg2: memref<2x3xf32, #tpu.memory_space<smem>>, %arg3: memref<2xf32, #tpu.memory_space<smem>>, %arg4: memref<64x128xf32, #tpu.memory_space<vmem>>, %arg5: memref<64x128xf32, #tpu.memory_space<vmem>>) attributes {dimension_semantics = [#tpu.dimension_semantics<parallel>], iteration_bounds = array<i64: 2>, scalar_prefetch = 0 : i64, scratch_operands = 0 : i64, tpu.core_type = #tpu.core_type<tc>, window_params = [{transform_indices = @transform_0, window_bounds = array<i64: 3, 2>}, {transform_indices = @transform_1, window_bounds = array<i64: 2, 3>}, {transform_indices = @transform_2, window_bounds = array<i64: 2>}, {transform_indices = @transform_3, window_bounds = array<i64: 64, 128>}, {transform_indices = @transform_4, window_bounds = array<i64: 64, 128>}]} {
    %c0 = arith.constant 0 : index
    %c0_0 = arith.constant 0 : index
    %0 = vector.load %arg4[%c0, %c0_0] : memref<64x128xf32, #tpu.memory_space<vmem>>, vector<64x128xf32>
    %c1_i32 = arith.constant 1 : i32
    %1 = tpu.dynamic_rotate %0 by %c1_i32 dim 1 : vector<64x128xf32>, i32 -> vector<64x128xf32>
    %c127_i32 = arith.constant 127 : i32
    %2 = tpu.dynamic_rotate %0 by %c127_i32 dim 1 : vector<64x128xf32>, i32 -> vector<64x128xf32>
    %3 = tpu.iota {dimensions = array<i32: 1>} : vector<64x128xi32>
    %c1_i32_1 = arith.constant 1 : i32
    %4 = vector.broadcast %c1_i32_1 : i32 to vector<64x128xi32>
    %5 = arith.andi %3, %4 : vector<64x128xi32>
    %c0_i32 = arith.constant 0 : i32
    %6 = vector.broadcast %c0_i32 : i32 to vector<64x128xi32>
    %7 = arith.cmpi eq, %5, %6 : vector<64x128xi32>
    %8 = arith.select %7, %0, %1 : vector<64x128xi1>, vector<64x128xf32>
    %9 = arith.select %7, %2, %0 : vector<64x128xi1>, vector<64x128xf32>
    %c0_2 = arith.constant 0 : index
    %10 = memref.load %arg3[%c0_2] : memref<2xf32, #tpu.memory_space<smem>>
    %c1 = arith.constant 1 : index
    %11 = memref.load %arg3[%c1] : memref<2xf32, #tpu.memory_space<smem>>
    %12 = vector.broadcast %10 : f32 to vector<64x128xf32>
    %13 = vector.broadcast %11 : f32 to vector<64x128xf32>
    %14 = arith.select %7, %12, %13 : vector<64x128xi1>, vector<64x128xf32>
    %c0_3 = arith.constant 0 : index
    %c0_4 = arith.constant 0 : index
    %15 = memref.load %arg1[%c0_3, %c0_4] : memref<3x2xf32, #tpu.memory_space<smem>>
    %16 = vector.broadcast %15 : f32 to vector<64x128xf32>
    %17 = arith.mulf %8, %16 : vector<64x128xf32>
    %c0_5 = arith.constant 0 : index
    %c1_6 = arith.constant 1 : index
    %18 = memref.load %arg1[%c0_5, %c1_6] : memref<3x2xf32, #tpu.memory_space<smem>>
    %19 = vector.broadcast %18 : f32 to vector<64x128xf32>
    %20 = arith.mulf %9, %19 : vector<64x128xf32>
    %21 = arith.addf %17, %20 : vector<64x128xf32>
    %22 = math.tanh %21 : vector<64x128xf32>
    %c0_7 = arith.constant 0 : index
    %c0_8 = arith.constant 0 : index
    %23 = memref.load %arg2[%c0_7, %c0_8] : memref<2x3xf32, #tpu.memory_space<smem>>
    %c1_9 = arith.constant 1 : index
    %c0_10 = arith.constant 0 : index
    %24 = memref.load %arg2[%c1_9, %c0_10] : memref<2x3xf32, #tpu.memory_space<smem>>
    %25 = vector.broadcast %23 : f32 to vector<64x128xf32>
    %26 = vector.broadcast %24 : f32 to vector<64x128xf32>
    %27 = arith.select %7, %25, %26 : vector<64x128xi1>, vector<64x128xf32>
    %28 = arith.mulf %22, %27 : vector<64x128xf32>
    %29 = arith.addf %14, %28 : vector<64x128xf32>
    %c1_11 = arith.constant 1 : index
    %c0_12 = arith.constant 0 : index
    %30 = memref.load %arg1[%c1_11, %c0_12] : memref<3x2xf32, #tpu.memory_space<smem>>
    %31 = vector.broadcast %30 : f32 to vector<64x128xf32>
    %32 = arith.mulf %8, %31 : vector<64x128xf32>
    %c1_13 = arith.constant 1 : index
    %c1_14 = arith.constant 1 : index
    %33 = memref.load %arg1[%c1_13, %c1_14] : memref<3x2xf32, #tpu.memory_space<smem>>
    %34 = vector.broadcast %33 : f32 to vector<64x128xf32>
    %35 = arith.mulf %9, %34 : vector<64x128xf32>
    %36 = arith.addf %32, %35 : vector<64x128xf32>
    %37 = math.tanh %36 : vector<64x128xf32>
    %c0_15 = arith.constant 0 : index
    %c1_16 = arith.constant 1 : index
    %38 = memref.load %arg2[%c0_15, %c1_16] : memref<2x3xf32, #tpu.memory_space<smem>>
    %c1_17 = arith.constant 1 : index
    %c1_18 = arith.constant 1 : index
    %39 = memref.load %arg2[%c1_17, %c1_18] : memref<2x3xf32, #tpu.memory_space<smem>>
    %40 = vector.broadcast %38 : f32 to vector<64x128xf32>
    %41 = vector.broadcast %39 : f32 to vector<64x128xf32>
    %42 = arith.select %7, %40, %41 : vector<64x128xi1>, vector<64x128xf32>
    %43 = arith.mulf %37, %42 : vector<64x128xf32>
    %44 = arith.addf %29, %43 : vector<64x128xf32>
    %c2 = arith.constant 2 : index
    %c0_19 = arith.constant 0 : index
    %45 = memref.load %arg1[%c2, %c0_19] : memref<3x2xf32, #tpu.memory_space<smem>>
    %46 = vector.broadcast %45 : f32 to vector<64x128xf32>
    %47 = arith.mulf %8, %46 : vector<64x128xf32>
    %c2_20 = arith.constant 2 : index
    %c1_21 = arith.constant 1 : index
    %48 = memref.load %arg1[%c2_20, %c1_21] : memref<3x2xf32, #tpu.memory_space<smem>>
    %49 = vector.broadcast %48 : f32 to vector<64x128xf32>
    %50 = arith.mulf %9, %49 : vector<64x128xf32>
    %51 = arith.addf %47, %50 : vector<64x128xf32>
    %52 = math.tanh %51 : vector<64x128xf32>
    %c0_22 = arith.constant 0 : index
    %c2_23 = arith.constant 2 : index
    %53 = memref.load %arg2[%c0_22, %c2_23] : memref<2x3xf32, #tpu.memory_space<smem>>
    %c1_24 = arith.constant 1 : index
    %c2_25 = arith.constant 2 : index
    %54 = memref.load %arg2[%c1_24, %c2_25] : memref<2x3xf32, #tpu.memory_space<smem>>
    %55 = vector.broadcast %53 : f32 to vector<64x128xf32>
    %56 = vector.broadcast %54 : f32 to vector<64x128xf32>
    %57 = arith.select %7, %55, %56 : vector<64x128xi1>, vector<64x128xf32>
    %58 = arith.mulf %52, %57 : vector<64x128xf32>
    %59 = arith.addf %44, %58 : vector<64x128xf32>
    %c0_26 = arith.constant 0 : index
    %c0_27 = arith.constant 0 : index
    %60 = vector.load %arg5[%c0_26, %c0_27] : memref<64x128xf32, #tpu.memory_space<vmem>>, vector<64x128xf32>
    tpu.vector_store %arg5[%c0_26, %c0_27], %59 {strides = array<i32>} : memref<64x128xf32, #tpu.memory_space<vmem>>, vector<64x128xf32>,
    return
  }
  func.func @transform_0(%arg0: i32) -> (i32, i32) {
    %c0_i32 = arith.constant 0 : i32
    %c0_i32_0 = arith.constant 0 : i32
    %c0_i32_1 = arith.constant 0 : i32
    return %c0_i32, %c0_i32_0 : i32, i32
  }
  func.func @transform_1(%arg0: i32) -> (i32, i32) {
    %c0_i32 = arith.constant 0 : i32
    %c0_i32_0 = arith.constant 0 : i32
    %c0_i32_1 = arith.constant 0 : i32
    return %c0_i32, %c0_i32_0 : i32, i32
  }
  func.func @transform_2(%arg0: i32) -> i32 {
    %c0_i32 = arith.constant 0 : i32
    %c0_i32_0 = arith.constant 0 : i32
    return %c0_i32 : i32
  }
  func.func @transform_3(%arg0: i32) -> (i32, i32) {
    %c0_i32 = arith.constant 0 : i32
    %c0_i32_0 = arith.constant 0 : i32
    return %arg0, %c0_i32 : i32, i32
  }
  func.func @transform_4(%arg0: i32) -> (i32, i32) {
    %c0_i32 = arith.constant 0 : i32
    %c0_i32_0 = arith.constant 0 : i32
    return %arg0, %c0_i32 : i32, i32
  }
}

</mosaic_0001>

<llo_original>
// kernel: tpu_custom_call.1
$region0: #{tpu_custom_call.1}
  #allocation0 [shape = 'u32[]', space=smem, size = 0x4, offset = 0x4, fixed_abs, tag = 'smem constant byte address 0x4 - core index']
  #allocation1 [shape = 'u32[72,128]{1,0:T(1,128)}', space=vmem, size = 0x9000, scoped, tag = 'internal scratch']
  %s0 = inlined_call_operand.vmem [shape: f32[3,2], index: 0, kind: input, shape index: {}]
  %s1 = inlined_call_operand.vmem [shape: f32[2,3], index: 1, kind: input, shape index: {}]
  %s2 = inlined_call_operand.vmem [shape: f32[2], index: 2, kind: input, shape index: {}]
  %s3 = inlined_call_operand.hbm [shape: f32[128,128], index: 3, kind: input, shape index: {}]
  %s4 = inlined_call_operand.hbm [shape: f32[128,128], index: 4, kind: output, shape index: {}]
  %s5 = sld [smem:[#allocation0]]
  $region65: #{tpu_custom_call.1} parent=0
    _
  %s7 = ssub.s32 1, %s5
  %s8 = scalar_select 0, %s7, %s5
  $region1: #{tpu_custom_call.1} parent=0
    #allocation2 [shape = 'u8[2048]{0}', space=smem, size = 0x800, scoped, tag = 'input window, operand 0, single buffered']
    #allocation3 [shape = 's32[2]{0}', space=sflag, size = 0x8, scoped, tag = 'scoped memory for tpu_custom_call.1']
    #allocation4 [shape = 's32[2]{0}', space=sflag, size = 0x8, scoped, tag = 'scoped memory for tpu_custom_call.1']
    #allocation5 [shape = 's32[2]{0}', space=sflag, size = 0x8, scoped, tag = 'scoped memory for tpu_custom_call.1']
    #allocation6 [shape = 'u8[1024]{0}', space=smem, size = 0x400, scoped, tag = 'input window, operand 1, single buffered']
    #allocation7 [shape = 's32[1]{0}', space=sflag, size = 0x4, scoped, tag = 'scoped memory for tpu_custom_call.1']
    #allocation8 [shape = 'u8[512]{0}', space=smem, size = 0x200, scoped, tag = 'input window, operand 2, single buffered']
    #allocation9 [shape = 'u8[65536]{0}', space=vmem, size = 0x10000, scoped, tag = 'input window, operand 3']
    #allocation10 [shape = 'u8[65536]{0}', space=vmem, size = 0x10000, scoped, tag = 'output window, operand 0']
    %9 = vsyncpa [#allocation5], 0
    %10 = vsyncpa [#allocation7], 0
    %11 = vsyncpa [#allocation3], 0
    %s12 = scalar_lea.sflag [#allocation3], 1
    %13 = vsyncpa %s12, 0
    %14 = vsyncpa [#allocation4], 0
    %s15 = scalar_lea.sflag [#allocation4], 1
    %16 = vsyncpa %s15, 0
    loop: start=0, step=1, limit=4
    $region2: #{tpu_custom_call.1} parent=1 // loop_pre_header
      _
    $region3: #{tpu_custom_call.1} parent=1 // loop_header
      %s18 = sphi 0, %s22
      %p19 = scmp.ge.s32.totalorder %s18, 4
      %s26 = sphi 0, %s26
      %s28 = sphi 0, %s26
      %s29 = sphi 0, %s28
      %s43 = sphi 0, %s29
      %s47 = sphi 0, %s47
      %s49 = sphi 0, %s47
      %s50 = sphi 0, %s49
      %s64 = sphi 0, %s50
      %s68 = sphi 0, %s68
      %s70 = sphi 0, %s68
      %s71 = sphi 0, %s70
      %s85 = sphi 0, %s71
      %s91 = sphi 0, %s93
      %s94 = sphi 0, %s91
      %s95 = sphi 0, %s94
      %s111 = sphi 0, %s95
      %s117 = sphi 0, %s119
      %s120 = sphi 0, %s117
      %s121 = sphi 0, %s120
      %s137 = sphi 0, %s121
    $region4: #{tpu_custom_call.1} parent=1 // loop_header_branch
      %21 = sbr.rel (%p19) target = $region8
    $region5: #{tpu_custom_call.1} parent=1 // loop_body
      %s23 = ssub.s32 %s18, 1
      %s24 = ssub.s32 %s18, 2
      %s25 = sadd.s32 %s18, 1
      %s27 = sadd.s32 %s26, 1
      %p30 = scmp.eq.s32.totalorder %s18, 1
      %p31 = scmp.ne.s32.totalorder %s26, %s28
      %p32 = scmp.eq.s32.totalorder %s18, 0
      %p33 = por %p31, %p32
      %p34 = scmp.ne.s32.totalorder %s26, %s28
      %p35 = scmp.eq.s32.totalorder %s23, 1
      %p36 = por %p34, %p35
      %p37 = scmp.ne.s32.totalorder %s28, %s29
      %p38 = scmp.eq.s32.totalorder %s23, 0
      %p39 = por %p37, %p38
      %p40 = scmp.ne.s32.totalorder %s28, %s29
      %p41 = scmp.eq.s32.totalorder %s24, 1
      %p42 = por %p40, %p41
      %p44 = scmp.ne.s32.totalorder %s29, %s43
      %p45 = scmp.eq.s32.totalorder %s24, 0
      %p46 = por %p44, %p45
      %s48 = sadd.s32 %s47, 1
      %p51 = scmp.eq.s32.totalorder %s18, 1
      %p52 = scmp.ne.s32.totalorder %s47, %s49
      %p53 = scmp.eq.s32.totalorder %s18, 0
      %p54 = por %p52, %p53
      %p55 = scmp.ne.s32.totalorder %s47, %s49
      %p56 = scmp.eq.s32.totalorder %s23, 1
      %p57 = por %p55, %p56
      %p58 = scmp.ne.s32.totalorder %s49, %s50
      %p59 = scmp.eq.s32.totalorder %s23, 0
      %p60 = por %p58, %p59
      %p61 = scmp.ne.s32.totalorder %s49, %s50
      %p62 = scmp.eq.s32.totalorder %s24, 1
      %p63 = por %p61, %p62
      %p65 = scmp.ne.s32.totalorder %s50, %s64
      %p66 = scmp.eq.s32.totalorder %s24, 0
      %p67 = por %p65, %p66
      %s69 = sadd.s32 %s68, 1
      %p72 = scmp.eq.s32.totalorder %s18, 1
      %p73 = scmp.ne.s32.totalorder %s68, %s70
      %p74 = scmp.eq.s32.totalorder %s18, 0
      %p75 = por %p73, %p74
      %p76 = scmp.ne.s32.totalorder %s68, %s70
      %p77 = scmp.eq.s32.totalorder %s23, 1
      %p78 = por %p76, %p77
      %p79 = scmp.ne.s32.totalorder %s70, %s71
      %p80 = scmp.eq.s32.totalorder %s23, 0
      %p81 = por %p79, %p80
      %p82 = scmp.ne.s32.totalorder %s70, %s71
      %p83 = scmp.eq.s32.totalorder %s24, 1
      %p84 = por %p82, %p83
      %p86 = scmp.ne.s32.totalorder %s71, %s85
      %p87 = scmp.eq.s32.totalorder %s24, 0
      %p88 = por %p86, %p87
      %s89 = ssub.s32 %s18, %s25
      %p90 = scmp.eq.s32.totalorder %s89, 0
      %s92 = sadd.s32 %s91, 1
      %s93 = scalar_select %p90, %s91, %s92
      %p96 = pneg %p90
      %p97 = scmp.eq.s32.totalorder %s18, 1
      %p98 = por %p96, %p97
      %p99 = scmp.ne.s32.totalorder %s91, %s94
      %p100 = scmp.eq.s32.totalorder %s18, 0
      %p101 = por %p99, %p100
      %p102 = scmp.ne.s32.totalorder %s91, %s94
      %p103 = scmp.eq.s32.totalorder %s23, 1
      %p104 = por %p102, %p103
      %p105 = scmp.ne.s32.totalorder %s94, %s95
      %p106 = scmp.eq.s32.totalorder %s23, 0
      %p107 = por %p105, %p106
      %p108 = scmp.ne.s32.totalorder %s94, %s95
      %p109 = scmp.eq.s32.totalorder %s24, 1
      %p110 = por %p108, %p109
      %p112 = scmp.ne.s32.totalorder %s95, %s111
      %p113 = scmp.eq.s32.totalorder %s24, 0
      %p114 = por %p112, %p113
      %s115 = ssub.s32 %s18, %s25
      %p116 = scmp.eq.s32.totalorder %s115, 0
      %s118 = sadd.s32 %s117, 1
      %s119 = scalar_select %p116, %s117, %s118
      %p122 = pneg %p116
      %p123 = scmp.eq.s32.totalorder %s18, 1
      %p124 = por %p122, %p123
      %p125 = scmp.ne.s32.totalorder %s117, %s120
      %p126 = scmp.eq.s32.totalorder %s18, 0
      %p127 = por %p125, %p126
      %p128 = scmp.ne.s32.totalorder %s117, %s120
      %p129 = scmp.eq.s32.totalorder %s23, 1
      %p130 = por %p128, %p129
      %p131 = scmp.ne.s32.totalorder %s120, %s121
      %p132 = scmp.eq.s32.totalorder %s23, 0
      %p133 = por %p131, %p132
      %p134 = scmp.ne.s32.totalorder %s120, %s121
      %p135 = scmp.eq.s32.totalorder %s24, 1
      %p136 = por %p134, %p135
      %p138 = scmp.ne.s32.totalorder %s121, %s137
      %p139 = scmp.eq.s32.totalorder %s24, 0
      %p140 = por %p138, %p139
      %p141 = scmp.le.s32.totalorder 1, %s18
      %p142 = scmp.lt.s32.totalorder %s18, 3
      %p143 = pnand %p141, %p142
      %p144 = pneg %p143
      // Predicated region
      $region9: #{tpu_custom_call.1} parent=5 // pred_check
        _
      $region10: #{tpu_custom_call.1} parent=5 // pred_check_branch
        %146 = sbr.rel (%p143) target = $region12
      $region11: #{tpu_custom_call.1} parent=5 // pred_region
        %s147 = ssub.s32 %s18, 1
        // Predicated region
        $region13: #{tpu_custom_call.1} parent=11 // pred_check
          %p148 = pneg %p39
        $region14: #{tpu_custom_call.1} parent=11 // pred_check_branch
          %150 = sbr.rel (%p148) target = $region16
        $region15: #{tpu_custom_call.1} parent=11 // pred_region
          %152 = vsyncadd [#allocation5], 0
          %s154 = sshll.u32 %s0, 4
          %s155 = int_to_ptr.vmem [resolvable:$true] %s154
          %157 = dma.vmem_to_smem %s155, 64, [#allocation2], [#allocation5]
        $region16: #{tpu_custom_call.1} parent=11 // pred_fallthru
          _
        // Predicated region
        $region17: #{tpu_custom_call.1} parent=11 // pred_check
          %p158 = pneg %p60
        $region18: #{tpu_custom_call.1} parent=11 // pred_check_branch
          %160 = sbr.rel (%p158) target = $region20
        $region19: #{tpu_custom_call.1} parent=11 // pred_region
          %162 = vsyncadd [#allocation7], 0
          %s164 = sshll.u32 %s1, 4
          %s165 = int_to_ptr.vmem [resolvable:$true] %s164
          %167 = dma.vmem_to_smem %s165, 32, [#allocation6], [#allocation7]
        $region20: #{tpu_custom_call.1} parent=11 // pred_fallthru
          _
        // Predicated region
        $region21: #{tpu_custom_call.1} parent=11 // pred_check
          %p168 = pneg %p81
        $region22: #{tpu_custom_call.1} parent=11 // pred_check_branch
          %170 = sbr.rel (%p168) target = $region24
        $region23: #{tpu_custom_call.1} parent=11 // pred_region
          %172 = vsyncadd [#allocation7], 0
          %s174 = sshll.u32 %s2, 4
          %s175 = int_to_ptr.vmem [resolvable:$true] %s174
          %177 = dma.vmem_to_smem %s175, 16, [#allocation8], [#allocation7]
        $region24: #{tpu_custom_call.1} parent=11 // pred_fallthru
          _
      $region12: #{tpu_custom_call.1} parent=5 // pred_fallthru
        _
      %p178 = scmp.lt.s32.totalorder %s18, 2
      // Predicated region
      $region25: #{tpu_custom_call.1} parent=5 // pred_check
        %p179 = pneg %p178
      $region26: #{tpu_custom_call.1} parent=5 // pred_check_branch
        %181 = sbr.rel (%p179) target = $region28
      $region27: #{tpu_custom_call.1} parent=5 // pred_region
        // Predicated region
        $region29: #{tpu_custom_call.1} parent=27 // pred_check
          %p182 = pneg %p101
        $region30: #{tpu_custom_call.1} parent=27 // pred_check_branch
          %184 = sbr.rel (%p182) target = $region32
        $region31: #{tpu_custom_call.1} parent=27 // pred_region
          %s185 = sand.u32 %s91, 1
          %s186 = scalar_lea.sflag [#allocation3], %s185
          %s187 = sand.u32 %s91, 1
          %s188 = smul.addr %s187, 64
          %s189 = scalar_lea.vmem [#allocation9], %s188
          %s190 = smul.u32 8, %s18
          %192 = vsyncadd %s186, 0
          %s193 = smul.addr %s190, 8
          %s194 = scalar_lea.hbm %s3, %s193
          %s195 = sshll.u32 %s194, 4
          %s196 = int_to_ptr.hbm [resolvable:$true] %s195
          %s197 = sshll.u32 %s189, 4
          %s198 = int_to_ptr.vmem [resolvable:$true] %s197
          %203 = dma.hbm_to_vmem [thread:$0]  %s196, 1024, %s198, %s186, 128, 128, 8
        $region32: #{tpu_custom_call.1} parent=27 // pred_fallthru
          _
      $region28: #{tpu_custom_call.1} parent=5 // pred_fallthru
        _
      %p204 = scmp.le.s32.totalorder 1, %s18
      %p205 = scmp.lt.s32.totalorder %s18, 3
      %p206 = pnand %p204, %p205
      %p207 = pneg %p206
      // Predicated region
      $region33: #{tpu_custom_call.1} parent=5 // pred_check
        _
      $region34: #{tpu_custom_call.1} parent=5 // pred_check_branch
        %209 = sbr.rel (%p206) target = $region36
      $region35: #{tpu_custom_call.1} parent=5 // pred_region
        %s210 = ssub.s32 %s18, 1
        // Predicated region
        $region37: #{tpu_custom_call.1} parent=35 // pred_check
          %p211 = pneg %p39
        $region38: #{tpu_custom_call.1} parent=35 // pred_check_branch
          %213 = sbr.rel (%p211) target = $region40
        $region39: #{tpu_custom_call.1} parent=35 // pred_region
          %215 = dma.done [#allocation5], 64
        $region40: #{tpu_custom_call.1} parent=35 // pred_fallthru
          _
        // Predicated region
        $region41: #{tpu_custom_call.1} parent=35 // pred_check
          %p216 = pneg %p60
        $region42: #{tpu_custom_call.1} parent=35 // pred_check_branch
          %218 = sbr.rel (%p216) target = $region44
        $region43: #{tpu_custom_call.1} parent=35 // pred_region
          %220 = dma.done [#allocation7], 32
        $region44: #{tpu_custom_call.1} parent=35 // pred_fallthru
          _
        // Predicated region
        $region45: #{tpu_custom_call.1} parent=35 // pred_check
          %p221 = pneg %p81
        $region46: #{tpu_custom_call.1} parent=35 // pred_check_branch
          %223 = sbr.rel (%p221) target = $region48
        $region47: #{tpu_custom_call.1} parent=35 // pred_region
          %225 = dma.done [#allocation7], 16
        $region48: #{tpu_custom_call.1} parent=35 // pred_fallthru
          _
        %s226 = sand.u32 %s94, 1
        %s227 = scalar_lea.sflag [#allocation3], %s226
        %s228 = sand.u32 %s94, 1
        %s229 = smul.addr %s228, 64
        %s230 = scalar_lea.vmem [#allocation9], %s229
        // Predicated region
        $region49: #{tpu_custom_call.1} parent=35 // pred_check
          %p231 = pneg %p107
        $region50: #{tpu_custom_call.1} parent=35 // pred_check_branch
          %233 = sbr.rel (%p231) target = $region52
        $region51: #{tpu_custom_call.1} parent=35 // pred_region
          %235 = dma.done %s227, 1024
        $region52: #{tpu_custom_call.1} parent=35 // pred_fallthru
          _
        %236 = sfence
        %p237 = pneg %p39
        %p238 = pneg %p36
        %p239 = pneg %p60
        %p240 = pneg %p57
        %p241 = pneg %p81
        %p242 = pneg %p78
        %s243 = sand.u32 %s94, 1
        %s244 = scalar_lea.sflag [#allocation3], %s243
        %s245 = sand.u32 %s94, 1
        %s246 = smul.addr %s245, 64
        %s247 = scalar_lea.vmem [#allocation9], %s246
        %p248 = pneg %p107
        %p249 = pneg %p104
        %p250 = pneg %p133
        %p251 = pneg %p130
        %s252 = sand.u32 %s120, 1
        %s253 = scalar_lea.sflag [#allocation4], %s252
        %s254 = sand.u32 %s120, 1
        %s255 = smul.addr %s254, 64
        %s256 = scalar_lea.vmem [#allocation10], %s255
        %s257 = smul.u32 8, %s23
        %s258 = smul.u32 8, %s23
        %v259 = vld [vmem:[%s230] sm:$0xff]
        %v260 = vld [vmem:[%s230 + $0x8] sm:$0xff]
        %v261 = vld [vmem:[%s230 + $0x10] sm:$0xff]
        %v262 = vld [vmem:[%s230 + $0x18] sm:$0xff]
        %v263 = vld [vmem:[%s230 + $0x20] sm:$0xff]
        %v264 = vld [vmem:[%s230 + $0x28] sm:$0xff]
        %v265 = vld [vmem:[%s230 + $0x30] sm:$0xff]
        %v266 = vld [vmem:[%s230 + $0x38] sm:$0xff]
        %267 = vrot.lane.b32.xlu0 %v259, 1
        %v268 = vpop.permute.xlu0 %267
        %269 = vrot.lane.b32.xlu0 %v260, 1
        %v270 = vpop.permute.xlu0 %269
        %271 = vrot.lane.b32.xlu0 %v261, 1
        %v272 = vpop.permute.xlu0 %271
        %273 = vrot.lane.b32.xlu0 %v262, 1
        %v274 = vpop.permute.xlu0 %273
        %275 = vrot.lane.b32.xlu0 %v263, 1
        %v276 = vpop.permute.xlu0 %275
        %277 = vrot.lane.b32.xlu0 %v264, 1
        %v278 = vpop.permute.xlu0 %277
        %279 = vrot.lane.b32.xlu0 %v265, 1
        %v280 = vpop.permute.xlu0 %279
        %281 = vrot.lane.b32.xlu0 %v266, 1
        %v282 = vpop.permute.xlu0 %281
        %283 = vrot.lane.b32.xlu0 %v259, 127
        %v284 = vpop.permute.xlu0 %283
        %285 = vrot.lane.b32.xlu0 %v260, 127
        %v286 = vpop.permute.xlu0 %285
        %287 = vrot.lane.b32.xlu0 %v261, 127
        %v288 = vpop.permute.xlu0 %287
        %289 = vrot.lane.b32.xlu0 %v262, 127
        %v290 = vpop.permute.xlu0 %289
        %291 = vrot.lane.b32.xlu0 %v263, 127
        %v292 = vpop.permute.xlu0 %291
        %293 = vrot.lane.b32.xlu0 %v264, 127
        %v294 = vpop.permute.xlu0 %293
        %295 = vrot.lane.b32.xlu0 %v265, 127
        %v296 = vpop.permute.xlu0 %295
        %297 = vrot.lane.b32.xlu0 %v266, 127
        %v298 = vpop.permute.xlu0 %297
        %v299 = vlaneseq
        %v300 = vand.u32 %v299, 127
        %v301 = vand.u32 %v300, 1
        %vm302 = vcmp.eq.s32.totalorder %v301, 0
        %v303 = vsel %vm302, %v259, %v268
        %v304 = vsel %vm302, %v260, %v270
        %v305 = vsel %vm302, %v261, %v272
        %v306 = vsel %vm302, %v262, %v274
        %v307 = vsel %vm302, %v263, %v276
        %v308 = vsel %vm302, %v264, %v278
        %v309 = vsel %vm302, %v265, %v280
        %v310 = vsel %vm302, %v266, %v282
        %v311 = vsel %vm302, %v284, %v259
        %v312 = vsel %vm302, %v286, %v260
        %v313 = vsel %vm302, %v288, %v261
        %v314 = vsel %vm302, %v290, %v262
        %v315 = vsel %vm302, %v292, %v263
        %v316 = vsel %vm302, %v294, %v264
        %v317 = vsel %vm302, %v296, %v265
        %v318 = vsel %vm302, %v298, %v266
        %s319 = sld [smem:[#allocation8]]
        %s320 = sld [smem:[#allocation8 + $0x1]]
        %v321 = vstv %s319
        %v322 = vstv %s320
        %v323 = vsel %vm302, %v321, %v322
        %s324 = sld [smem:[#allocation2]]
        %v325 = vstv %s324
        %v326 = vmul.f32 %v303, %v325
        %v327 = vmul.f32 %v304, %v325
        %v328 = vmul.f32 %v305, %v325
        %v329 = vmul.f32 %v306, %v325
        %v330 = vmul.f32 %v307, %v325
        %v331 = vmul.f32 %v308, %v325
        %v332 = vmul.f32 %v309, %v325
        %v333 = vmul.f32 %v310, %v325
        %s334 = sld [smem:[#allocation2 + $0x1]]
        %v335 = vstv %s334
        %v336 = vmul.f32 %v311, %v335
        %v337 = vmul.f32 %v312, %v335
        %v338 = vmul.f32 %v313, %v335
        %v339 = vmul.f32 %v314, %v335
        %v340 = vmul.f32 %v315, %v335
        %v341 = vmul.f32 %v316, %v335
        %v342 = vmul.f32 %v317, %v335
        %v343 = vmul.f32 %v318, %v335
        %v344 = vadd.f32 %v326, %v336
        %v345 = vadd.f32 %v327, %v337
        %v346 = vadd.f32 %v328, %v338
        %v347 = vadd.f32 %v329, %v339
        %v348 = vadd.f32 %v330, %v340
        %v349 = vadd.f32 %v331, %v341
        %v350 = vadd.f32 %v332, %v342
        %v351 = vadd.f32 %v333, %v343
        %v352 = vtanh.pop %v344
        %v353 = vtanh.pop %v345
        %v354 = vtanh.pop %v346
        %v355 = vtanh.pop %v347
        %v356 = vtanh.pop %v348
        %v357 = vtanh.pop %v349
        %v358 = vtanh.pop %v350
        %v359 = vtanh.pop %v351
        %s360 = sld [smem:[#allocation6]]
        %s361 = sld [smem:[#allocation6 + $0x80]]
        %v362 = vstv %s360
        %v363 = vstv %s361
        %v364 = vsel %vm302, %v362, %v363
        %v365 = vmul.f32 %v352, %v364
        %v366 = vmul.f32 %v353, %v364
        %v367 = vmul.f32 %v354, %v364
        %v368 = vmul.f32 %v355, %v364
        %v369 = vmul.f32 %v356, %v364
        %v370 = vmul.f32 %v357, %v364
        %v371 = vmul.f32 %v358, %v364
        %v372 = vmul.f32 %v359, %v364
        %v373 = vadd.f32 %v323, %v365
        %v374 = vadd.f32 %v323, %v366
        %v375 = vadd.f32 %v323, %v367
        %v376 = vadd.f32 %v323, %v368
        %v377 = vadd.f32 %v323, %v369
        %v378 = vadd.f32 %v323, %v370
        %v379 = vadd.f32 %v323, %v371
        %v380 = vadd.f32 %v323, %v372
        %s381 = sld [smem:[#allocation2 + $0x80]]
        %v382 = vstv %s381
        %v383 = vmul.f32 %v303, %v382
        %v384 = vmul.f32 %v304, %v382
        %v385 = vmul.f32 %v305, %v382
        %v386 = vmul.f32 %v306, %v382
        %v387 = vmul.f32 %v307, %v382
        %v388 = vmul.f32 %v308, %v382
        %v389 = vmul.f32 %v309, %v382
        %v390 = vmul.f32 %v310, %v382
        %s391 = sld [smem:[#allocation2 + $0x81]]
        %v392 = vstv %s391
        %v393 = vmul.f32 %v311, %v392
        %v394 = vmul.f32 %v312, %v392
        %v395 = vmul.f32 %v313, %v392
        %v396 = vmul.f32 %v314, %v392
        %v397 = vmul.f32 %v315, %v392
        %v398 = vmul.f32 %v316, %v392
        %v399 = vmul.f32 %v317, %v392
        %v400 = vmul.f32 %v318, %v392
        %v401 = vadd.f32 %v383, %v393
        %v402 = vadd.f32 %v384, %v394
        %v403 = vadd.f32 %v385, %v395
        %v404 = vadd.f32 %v386, %v396
        %v405 = vadd.f32 %v387, %v397
        %v406 = vadd.f32 %v388, %v398
        %v407 = vadd.f32 %v389, %v399
        %v408 = vadd.f32 %v390, %v400
        %v409 = vtanh.pop %v401
        %v410 = vtanh.pop %v402
        %v411 = vtanh.pop %v403
        %v412 = vtanh.pop %v404
        %v413 = vtanh.pop %v405
        %v414 = vtanh.pop %v406
        %v415 = vtanh.pop %v407
        %v416 = vtanh.pop %v408
        %s417 = sld [smem:[#allocation6 + $0x1]]
        %s418 = sld [smem:[#allocation6 + $0x81]]
        %v419 = vstv %s417
        %v420 = vstv %s418
        %v421 = vsel %vm302, %v419, %v420
        %v422 = vmul.f32 %v409, %v421
        %v423 = vmul.f32 %v410, %v421
        %v424 = vmul.f32 %v411, %v421
        %v425 = vmul.f32 %v412, %v421
        %v426 = vmul.f32 %v413, %v421
        %v427 = vmul.f32 %v414, %v421
        %v428 = vmul.f32 %v415, %v421
        %v429 = vmul.f32 %v416, %v421
        %v430 = vadd.f32 %v373, %v422
        %v431 = vadd.f32 %v374, %v423
        %v432 = vadd.f32 %v375, %v424
        %v433 = vadd.f32 %v376, %v425
        %v434 = vadd.f32 %v377, %v426
        %v435 = vadd.f32 %v378, %v427
        %v436 = vadd.f32 %v379, %v428
        %v437 = vadd.f32 %v380, %v429
        %s438 = sld [smem:[#allocation2 + $0x100]]
        %v439 = vstv %s438
        %v440 = vmul.f32 %v303, %v439
        %v441 = vmul.f32 %v304, %v439
        %v442 = vmul.f32 %v305, %v439
        %v443 = vmul.f32 %v306, %v439
        %v444 = vmul.f32 %v307, %v439
        %v445 = vmul.f32 %v308, %v439
        %v446 = vmul.f32 %v309, %v439
        %v447 = vmul.f32 %v310, %v439
        %s448 = sld [smem:[#allocation2 + $0x101]]
        %v449 = vstv %s448
        %v450 = vmul.f32 %v311, %v449
        %v451 = vmul.f32 %v312, %v449
        %v452 = vmul.f32 %v313, %v449
        %v453 = vmul.f32 %v314, %v449
        %v454 = vmul.f32 %v315, %v449
        %v455 = vmul.f32 %v316, %v449
        %v456 = vmul.f32 %v317, %v449
        %v457 = vmul.f32 %v318, %v449
        %v458 = vadd.f32 %v440, %v450
        %v459 = vadd.f32 %v441, %v451
        %v460 = vadd.f32 %v442, %v452
        %v461 = vadd.f32 %v443, %v453
        %v462 = vadd.f32 %v444, %v454
        %v463 = vadd.f32 %v445, %v455
        %v464 = vadd.f32 %v446, %v456
        %v465 = vadd.f32 %v447, %v457
        %v466 = vtanh.pop %v458
        %v467 = vtanh.pop %v459
        %v468 = vtanh.pop %v460
        %v469 = vtanh.pop %v461
        %v470 = vtanh.pop %v462
        %v471 = vtanh.pop %v463
        %v472 = vtanh.pop %v464
        %v473 = vtanh.pop %v465
        %s474 = sld [smem:[#allocation6 + $0x2]]
        %s475 = sld [smem:[#allocation6 + $0x82]]
        %v476 = vstv %s474
        %v477 = vstv %s475
        %v478 = vsel %vm302, %v476, %v477
        %v479 = vmul.f32 %v466, %v478
        %v480 = vmul.f32 %v467, %v478
        %v481 = vmul.f32 %v468, %v478
        %v482 = vmul.f32 %v469, %v478
        %v483 = vmul.f32 %v470, %v478
        %v484 = vmul.f32 %v471, %v478
        %v485 = vmul.f32 %v472, %v478
        %v486 = vmul.f32 %v473, %v478
        %v487 = vadd.f32 %v430, %v479
        %v488 = vadd.f32 %v431, %v480
        %v489 = vadd.f32 %v432, %v481
        %v490 = vadd.f32 %v433, %v482
        %v491 = vadd.f32 %v434, %v483
        %v492 = vadd.f32 %v435, %v484
        %v493 = vadd.f32 %v436, %v485
        %v494 = vadd.f32 %v437, %v486
        %495 = vst [vmem:[%s256] sm:$0xff] %v487
        %496 = vst [vmem:[%s256 + $0x8] sm:$0xff] %v488
        %497 = vst [vmem:[%s256 + $0x10] sm:$0xff] %v489
        %498 = vst [vmem:[%s256 + $0x18] sm:$0xff] %v490
        %499 = vst [vmem:[%s256 + $0x20] sm:$0xff] %v491
        %500 = vst [vmem:[%s256 + $0x28] sm:$0xff] %v492
        %501 = vst [vmem:[%s256 + $0x30] sm:$0xff] %v493
        %502 = vst [vmem:[%s256 + $0x38] sm:$0xff] %v494
        %s503 = sand.u32 %s120, 1
        %s504 = scalar_lea.sflag [#allocation4], %s503
        %s505 = sand.u32 %s120, 1
        %s506 = smul.addr %s505, 64
        %s507 = scalar_lea.vmem [#allocation10], %s506
        // Predicated region
        $region53: #{tpu_custom_call.1} parent=35 // pred_check
          %p508 = pneg %p130
        $region54: #{tpu_custom_call.1} parent=35 // pred_check_branch
          %510 = sbr.rel (%p508) target = $region56
        $region55: #{tpu_custom_call.1} parent=35 // pred_region
          %s511 = smul.u32 8, %s23
          %513 = vsyncadd %s504, 0
          %s514 = smul.addr %s511, 8
          %s515 = scalar_lea.hbm %s4, %s514
          %s516 = sshll.u32 %s507, 4
          %s517 = int_to_ptr.vmem [resolvable:$true] %s516
          %s518 = sshll.u32 %s515, 4
          %s519 = int_to_ptr.hbm [resolvable:$true] %s518
          %524 = dma.vmem_to_hbm [thread:$0]  %s517, 1024, %s519, %s504, 128, 128, 8
        $region56: #{tpu_custom_call.1} parent=35 // pred_fallthru
          _
      $region36: #{tpu_custom_call.1} parent=5 // pred_fallthru
        _
      %p525 = scmp.le.s32.totalorder 2, %s18
      // Predicated region
      $region57: #{tpu_custom_call.1} parent=5 // pred_check
        %p526 = pneg %p525
      $region58: #{tpu_custom_call.1} parent=5 // pred_check_branch
        %528 = sbr.rel (%p526) target = $region60
      $region59: #{tpu_custom_call.1} parent=5 // pred_region
        %s529 = ssub.s32 %s18, 2
        // Predicated region
        $region61: #{tpu_custom_call.1} parent=59 // pred_check
          %p530 = pneg %p136
        $region62: #{tpu_custom_call.1} parent=59 // pred_check_branch
          %532 = sbr.rel (%p530) target = $region64
        $region63: #{tpu_custom_call.1} parent=59 // pred_region
          %s533 = sand.u32 %s121, 1
          %s534 = scalar_lea.sflag [#allocation4], %s533
          %s535 = sand.u32 %s121, 1
          %s536 = smul.addr %s535, 64
          %s537 = scalar_lea.vmem [#allocation10], %s536
          %539 = dma.done %s534, 1024
        $region64: #{tpu_custom_call.1} parent=59 // pred_fallthru
          _
      $region60: #{tpu_custom_call.1} parent=5 // pred_fallthru
        _
    $region6: #{tpu_custom_call.1} parent=1 // loop_footer
      %s22 = sadd.s32 1, %s18
    $region7: #{tpu_custom_call.1} parent=1 // loop_footer_branch
      %17 = sbr.rel target = $region3
    $region8: #{tpu_custom_call.1} parent=1 // loop_exit
      _
    %540 = vsyncpa [#allocation3], 1
    %s541 = scalar_lea.sflag [#allocation3], 1
    %542 = vsyncpa %s541, 1
    %543 = vsyncpa [#allocation4], 1
    %s544 = scalar_lea.sflag [#allocation4], 1
    %545 = vsyncpa %s544, 1
    %546 = vsyncpa [#allocation5], 1
    %s547 = scalar_lea.sflag [#allocation5], 1
    %548 = vsyncpa %s547, 1
    %549 = vsyncpa [#allocation7], 1

</llo_original>
